<compile_context>
chip_gen: v7x
topology: tpu7x:2x2x1
jax: 0.10.0
libtpu: 0.0.40
codegen_flags: <defaults>
</compile_context>

<pallas_src>
import functools

import jax
import jax.numpy as jnp
from jax.experimental import pallas as pl
from jax.experimental.pallas import tpu as pltpu

EPS = 1e-5


def _resblock_kernel(x_ref, wb1_ref, b1_ref, g1_ref, be1_ref,
                     wb2_ref, b2_ref, g2_ref, be2_ref, p_ref, out_ref):
    """Fused ResBlock forward on a lane-dense (H, L = N*W*C) slab.

    x_ref   : (H, L)  f32   rows = h, lanes = n*W*C + w*C + c
    wb*_ref : (3L, L) bf16/f32  stacked banded conv weights [ky=0; ky=1; ky=2]
    b*_ref  : (1, L)  f32   conv bias tiled over (n, w)
    g*/be*  : (1, L)  f32   BN gamma / beta tiled over (n, w)
    p_ref   : (L, L)  f32   channel-averaging projection kron(1/(NW), I_C)
    out_ref : (H, L)  f32
    """
    H, L = x_ref.shape
    inv_h = 1.0 / float(H)
    wd = wb1_ref.dtype                       # MXU operand dtype (bf16 or f32)

    x = x_ref[...]

    # Row-boundary masks for the ky = 0 / 2 taps (height zero-padding).
    # Rows of the slab are exactly h, so only the first / last row is masked.
    row = jax.lax.broadcasted_iota(jnp.int32, (H, L), 0)
    not_top = row > 0
    not_bot = row < (H - 1)

    def conv3x3(a, wb_ref, b_ref):
        # Row shifts via XLU sublane rotate; the wrapped-around boundary row
        # is zeroed by the mask (== zero height-padding).  Rolls stay in f32.
        down = jnp.where(not_top, pltpu.roll(a, 1, 0), 0.0)       # a[h-1]
        up = jnp.where(not_bot, pltpu.roll(a, H - 1, 0), 0.0)     # a[h+1]
        # One fused-K matmul: LHS (H, 3L) @ stacked bands (3L, L).
        lhs = jnp.concatenate(
            [down.astype(wd), a.astype(wd), up.astype(wd)], axis=1)
        z = jnp.dot(lhs, wb_ref[...], preferred_element_type=jnp.float32)
        return z + b_ref[...]

    def batchnorm(z, g_ref, be_ref):
        # Single-pass biased batch stats over (N, H, W): per-lane sums over
        # rows, then ONE tiny matmul with the channel-averaging projection P
        # returns mean and E[z^2] broadcast back to every (n, w, c) lane.
        s1 = jnp.sum(z, axis=0, keepdims=True) * inv_h            # (1, L)
        s2 = jnp.sum(z * z, axis=0, keepdims=True) * inv_h        # (1, L)
        stats = jnp.dot(jnp.concatenate([s1, s2], axis=0), p_ref[...],
                        preferred_element_type=jnp.float32)       # (2, L)
        mean = stats[0:1, :]
        var = stats[1:2, :] - mean * mean                         # biased var
        scale = g_ref[...] * jax.lax.rsqrt(var + EPS)
        offset = be_ref[...] - mean * scale
        return z * scale + offset

    # conv1 -> bn1 -> relu
    h1 = jnp.maximum(batchnorm(conv3x3(x, wb1_ref, b1_ref), g1_ref, be1_ref),
                     0.0)
    # conv2 -> bn2 -> +residual -> relu
    z2 = batchnorm(conv3x3(h1, wb2_ref, b2_ref), g2_ref, be2_ref)
    out_ref[...] = jnp.maximum(z2 + x, 0.0).astype(out_ref.dtype)


def _band_conv_weights(w_oihw, batch, width, mxu_dtype):
    """PyTorch (Cout, Cin, 3, 3) conv weight -> (3*L, L) stacked banded mats.

    For tap ky, band[n*WC + w_in*C + ci, n*WC + w_out*C + co] = w[co,ci,ky,kx]
    with kx = w_in - w_out + 1 in [0, 2]; missing diagonals at the width edges
    encode the width zero-padding, kron(I_N, .) keeps images independent.
    The three taps are stacked along rows in [ky=0; ky=1; ky=2] order to match
    the kernel's [down | mid | up] lane-concatenated LHS.
    """
    w_hwio = jnp.transpose(w_oihw.astype(jnp.float32), (2, 3, 1, 0))  # (3,3,Ci,Co)
    shifts = [jnp.eye(width, k=1, dtype=jnp.float32),    # kx=0: w_in = w_out-1
              jnp.eye(width, k=0, dtype=jnp.float32),    # kx=1: w_in = w_out
              jnp.eye(width, k=-1, dtype=jnp.float32)]   # kx=2: w_in = w_out+1
    eye_n = jnp.eye(batch, dtype=jnp.float32)
    bands = []
    for ky in range(3):
        band = (jnp.kron(shifts[0], w_hwio[ky, 0])
                + jnp.kron(shifts[1], w_hwio[ky, 1])
                + jnp.kron(shifts[2], w_hwio[ky, 2]))
        bands.append(jnp.kron(eye_n, band))
    return jnp.concatenate(bands, axis=0).astype(mxu_dtype)   # (3*L, L)


def _tile_lanes(v, reps):
    # (C,) -> (1, reps*C) with lane g*C + c holding v[c]
    return jnp.tile(v.astype(jnp.float32).reshape(1, -1), (1, reps))


def _padded_bytes(shape, dtype):
    """VMEM footprint of one buffer after (sublane, 128)-tile padding."""
    dt = jnp.dtype(dtype)
    sub = 8 * (4 // max(dt.itemsize, 1)) if dt.itemsize < 4 else 8
    shape = tuple(shape)
    if len(shape) < 2:
        shape = (1,) * (2 - len(shape)) + shape
    lead = 1
    for d in shape[:-2]:
        lead *= int(d)
    rows = -(-int(shape[-2]) // sub) * sub
    cols = -(-int(shape[-1]) // 128) * 128
    return lead * rows * cols * dt.itemsize


def _resblock_hnwc(x_hnwc, params, mxu_dtype):
    """Core fused block on an (H, N, W, C) array; returns (H, N, W, C)."""
    H, N, W, C = x_hnwc.shape
    L = N * W * C
    reps = N * W

    x2 = x_hnwc.astype(jnp.float32).reshape(H, L)

    wb1 = _band_conv_weights(params["w1"], N, W, mxu_dtype)
    wb2 = _band_conv_weights(params["w2"], N, W, mxu_dtype)
    b1t, g1t, be1t = (_tile_lanes(params[k], reps) for k in ("b1", "g1", "be1"))
    b2t, g2t, be2t = (_tile_lanes(params[k], reps) for k in ("b2", "g2", "be2"))

    # Channel-averaging projection over the (n, w) lane groups (kept f32 for
    # BN-stat precision): (s @ P)[g*C+c] = mean over g' of s[g'*C+c].
    proj = jnp.kron(jnp.full((reps, reps), 1.0 / reps, dtype=jnp.float32),
                    jnp.eye(C, dtype=jnp.float32))

    operands = (x2, wb1, b1t, g1t, be1t, wb2, b2t, g2t, be2t, proj)

    # Real VMEM accounting (padded operands + output + fused-K intermediates)
    # with a ~2x margin for compiler scratch, clamped to v7x's 64 MiB.
    buf_bytes = sum(_padded_bytes(o.shape, o.dtype) for o in operands)
    buf_bytes += _padded_bytes((H, L), jnp.float32)              # output
    buf_bytes += 3 * _padded_bytes((H, 3 * L), jnp.float32)      # conv LHS etc.
    vmem_limit = int(min(max(2 * buf_bytes + (2 << 20), 4 << 20), 64 << 20))

    flops = 2 * (2 * H * (3 * L) * L) + 2 * (2 * 2 * L * L)
    cost = pl.CostEstimate(flops=int(flops), transcendentals=int(2 * L),
                           bytes_accessed=int(buf_bytes))

    vmem = pl.BlockSpec(memory_space=pltpu.MemorySpace.VMEM)
    out2 = pl.pallas_call(
        _resblock_kernel,
        out_shape=jax.ShapeDtypeStruct((H, L), jnp.float32),
        in_specs=[vmem] * len(operands),
        out_specs=vmem,
        input_output_aliases={0: 0},          # x slab is consumed; reuse HBM
        cost_estimate=cost,
        compiler_params=pltpu.CompilerParams(vmem_limit_bytes=vmem_limit),
    )(*operands)

    return out2.reshape(H, N, W, C)


def resblock_pallas_nhwc(x_nhwc, params, *, mxu_dtype=jnp.bfloat16):
    """ResBlock forward, NHWC in / NHWC out (one relayout transpose per side)."""
    y = _resblock_hnwc(jnp.transpose(x_nhwc, (1, 0, 2, 3)), params, mxu_dtype)
    return jnp.transpose(y, (1, 0, 2, 3))


def resblock_pallas(x_nchw, params, *, mxu_dtype=jnp.bfloat16):
    """PyTorch-convention wrapper: NCHW f32 in / NCHW f32 out.

    Goes NCHW -> (H, N, W, C) with a single transpose (no NHWC hop).
    """
    x_hnwc = jnp.transpose(x_nchw.astype(jnp.float32), (2, 0, 3, 1))
    y_hnwc = _resblock_hnwc(x_hnwc, params, mxu_dtype)
    return jnp.transpose(y_hnwc, (1, 3, 0, 2))


def resblock_reference(x, params):
    """Pure-JAX reference (NCHW, training-mode BN), validates the kernel."""
    def conv(h, w, b):
        y = jax.lax.conv_general_dilated(
            h, w, window_strides=(1, 1), padding=((1, 1), (1, 1)),
            dimension_numbers=("NCHW", "OIHW", "NCHW"))
        return y + b[None, :, None, None]

    def bn(h, g, be):
        mean = jnp.mean(h, axis=(0, 2, 3), keepdims=True)
        var = jnp.mean((h - mean) ** 2, axis=(0, 2, 3), keepdims=True)
        return ((h - mean) * jax.lax.rsqrt(var + EPS)
                * g[None, :, None, None] + be[None, :, None, None])

    h = jax.nn.relu(bn(conv(x, params["w1"], params["b1"]),
                       params["g1"], params["be1"]))
    z = bn(conv(h, params["w2"], params["b2"]), params["g2"], params["be2"])
    return jax.nn.relu(z + x)


def make_params(key, num_channels):
    ks = jax.random.split(key, 8)
    fan_in = num_channels * 9
    scale = 1.0 / jnp.sqrt(fan_in)
    shape_w = (num_channels, num_channels, 3, 3)
    return {
        "w1": jax.random.uniform(ks[0], shape_w, jnp.float32, -scale, scale),
        "b1": jax.random.uniform(ks[1], (num_channels,), jnp.float32, -scale, scale),
        "w2": jax.random.uniform(ks[2], shape_w, jnp.float32, -scale, scale),
        "b2": jax.random.uniform(ks[3], (num_channels,), jnp.float32, -scale, scale),
        "g1": 1.0 + 0.1 * jax.random.normal(ks[4], (num_channels,), jnp.float32),
        "be1": 0.1 * jax.random.normal(ks[5], (num_channels,), jnp.float32),
        "g2": 1.0 + 0.1 * jax.random.normal(ks[6], (num_channels,), jnp.float32),
        "be2": 0.1 * jax.random.normal(ks[7], (num_channels,), jnp.float32),
    }


if __name__ == "__main__":
    key = jax.random.PRNGKey(0)
    k_x, k_p = jax.random.split(key)

    N, C, H, W = 2, 4, 16, 16          # lane dim = N*W*C = 128 (full vregs)
    x = jax.random.normal(k_x, (N, C, H, W), jnp.float32)
    params = make_params(k_p, C)

    y_ref = resblock_reference(x, params)

    # Default path: bf16 MXU operands on every generation, f32 accumulation.
    y = jax.block_until_ready(jax.jit(resblock_pallas)(x, params))
    assert y.shape == x.shape
    err = float(jnp.max(jnp.abs(y - y_ref)))
    assert err < 1e-1, f"bf16-MXU mismatch vs pure-JAX reference: {err}"

    # Exact-semantics f32 MXU path.
    y32 = jax.block_until_ready(
        jax.jit(functools.partial(resblock_pallas, mxu_dtype=jnp.float32))(
            x, params))
    err32 = float(jnp.max(jnp.abs(y32 - y_ref)))
    assert err32 < 1e-3, f"f32 mismatch vs pure-JAX reference: {err32}"

    print("KERNEL_OK")
</pallas_src>

<mosaic_0001>
module attributes {stable_mosaic.version = 11 : i64} {
  func.func @_resblock_kernel(%arg0: memref<16x128xf32, #tpu.memory_space<vmem>>, %arg1: memref<384x128xbf16, #tpu.memory_space<vmem>>, %arg2: memref<1x128xf32, #tpu.memory_space<vmem>>, %arg3: memref<1x128xf32, #tpu.memory_space<vmem>>, %arg4: memref<1x128xf32, #tpu.memory_space<vmem>>, %arg5: memref<384x128xbf16, #tpu.memory_space<vmem>>, %arg6: memref<1x128xf32, #tpu.memory_space<vmem>>, %arg7: memref<1x128xf32, #tpu.memory_space<vmem>>, %arg8: memref<1x128xf32, #tpu.memory_space<vmem>>, %arg9: memref<128x128xf32, #tpu.memory_space<vmem>>, %arg10: memref<16x128xf32, #tpu.memory_space<vmem>>) attributes {dimension_semantics = [], scalar_prefetch = 0 : i64, scratch_operands = 0 : i64, tpu.core_type = #tpu.core_type<tc>} {
    %c0 = arith.constant 0 : index
    %c0_0 = arith.constant 0 : index
    %0 = vector.load %arg0[%c0, %c0_0] : memref<16x128xf32, #tpu.memory_space<vmem>>, vector<16x128xf32>
    %1 = tpu.iota {dimensions = array<i32: 0>} : vector<16x128xi32>
    %c0_i32 = arith.constant 0 : i32
    %2 = vector.broadcast %c0_i32 : i32 to vector<16x128xi32>
    %3 = arith.cmpi sgt, %1, %2 : vector<16x128xi32>
    %c15_i32 = arith.constant 15 : i32
    %4 = vector.broadcast %c15_i32 : i32 to vector<16x128xi32>
    %5 = arith.cmpi slt, %1, %4 : vector<16x128xi32>
    %c1_i32 = arith.constant 1 : i32
    %6 = tpu.dynamic_rotate %0 by %c1_i32 dim 0 : vector<16x128xf32>, i32 -> vector<16x128xf32>
    %cst = arith.constant 0.000000e+00 : f32
    %7 = vector.broadcast %cst : f32 to vector<16x128xf32>
    %8 = arith.select %3, %6, %7 : vector<16x128xi1>, vector<16x128xf32>
    %c15_i32_1 = arith.constant 15 : i32
    %9 = tpu.dynamic_rotate %0 by %c15_i32_1 dim 0 : vector<16x128xf32>, i32 -> vector<16x128xf32>
    %cst_2 = arith.constant 0.000000e+00 : f32
    %10 = vector.broadcast %cst_2 : f32 to vector<16x128xf32>
    %11 = arith.select %5, %9, %10 : vector<16x128xi1>, vector<16x128xf32>
    %12 = arith.truncf %8 : vector<16x128xf32> to vector<16x128xbf16>
    %13 = arith.truncf %0 : vector<16x128xf32> to vector<16x128xbf16>
    %14 = arith.truncf %11 : vector<16x128xf32> to vector<16x128xbf16>
    %15 = tpu.concatenate %12, %13, %14 in 1 : vector<16x128xbf16>, vector<16x128xbf16>, vector<16x128xbf16> -> vector<16x384xbf16>
    %c0_3 = arith.constant 0 : index
    %c0_4 = arith.constant 0 : index
    %16 = vector.load %arg1[%c0_3, %c0_4] : memref<384x128xbf16, #tpu.memory_space<vmem>>, vector<384x128xbf16>
    %cst_5 = arith.constant dense<0.000000e+00> : vector<16x128xf32>
    %17 = tpu.matmul %15, %16, %cst_5 {dimension_numbers = #tpu.dot_dimension_numbers<[1], [0], [0], [1], [0, 0, 1, 1], [], []>} : vector<16x384xbf16>, vector<384x128xbf16>, vector<16x128xf32> -> vector<16x128xf32>
    %c0_6 = arith.constant 0 : index
    %c0_7 = arith.constant 0 : index
    %18 = vector.load %arg2[%c0_6, %c0_7] : memref<1x128xf32, #tpu.memory_space<vmem>>, vector<1x128xf32>
    %19 = vector.broadcast %18 : vector<1x128xf32> to vector<16x128xf32>
    %20 = arith.addf %17, %19 : vector<16x128xf32>
    %cst_8 = arith.constant dense<0.000000e+00> : vector<128xf32>
    %21 = vector.multi_reduction <add>, %20, %cst_8 [0] : vector<16x128xf32> to vector<128xf32>
    %22 = vector.shape_cast %21 : vector<128xf32> to vector<1x128xf32>
    %cst_9 = arith.constant 6.250000e-02 : f32
    %23 = vector.broadcast %cst_9 : f32 to vector<1x128xf32>
    %24 = arith.mulf %22, %23 : vector<1x128xf32>
    %25 = arith.mulf %20, %20 : vector<16x128xf32>
    %cst_10 = arith.constant dense<0.000000e+00> : vector<128xf32>
    %26 = vector.multi_reduction <add>, %25, %cst_10 [0] : vector<16x128xf32> to vector<128xf32>
    %27 = vector.shape_cast %26 : vector<128xf32> to vector<1x128xf32>
    %cst_11 = arith.constant 6.250000e-02 : f32
    %28 = vector.broadcast %cst_11 : f32 to vector<1x128xf32>
    %29 = arith.mulf %27, %28 : vector<1x128xf32>
    %30 = tpu.concatenate %24, %29 in 0 : vector<1x128xf32>, vector<1x128xf32> -> vector<2x128xf32>
    %c0_12 = arith.constant 0 : index
    %c0_13 = arith.constant 0 : index
    %31 = vector.load %arg9[%c0_12, %c0_13] : memref<128x128xf32, #tpu.memory_space<vmem>>, vector<128x128xf32>
    %cst_14 = arith.constant dense<0.000000e+00> : vector<2x128xf32>
    %32 = tpu.matmul %30, %31, %cst_14 {dimension_numbers = #tpu.dot_dimension_numbers<[1], [0], [0], [1], [0, 0, 1, 1], [], []>} : vector<2x128xf32>, vector<128x128xf32>, vector<2x128xf32> -> vector<2x128xf32>
    %33 = vector.extract_strided_slice %32 {offsets = [0, 0], sizes = [1, 128], strides = [1, 1]} : vector<2x128xf32> to vector<1x128xf32>
    %34 = vector.extract_strided_slice %32 {offsets = [1, 0], sizes = [1, 128], strides = [1, 1]} : vector<2x128xf32> to vector<1x128xf32>
    %35 = arith.mulf %33, %33 : vector<1x128xf32>
    %36 = arith.subf %34, %35 : vector<1x128xf32>
    %c0_15 = arith.constant 0 : index
    %c0_16 = arith.constant 0 : index
    %37 = vector.load %arg3[%c0_15, %c0_16] : memref<1x128xf32, #tpu.memory_space<vmem>>, vector<1x128xf32>
    %cst_17 = arith.constant 9.99999974E-6 : f32
    %38 = vector.broadcast %cst_17 : f32 to vector<1x128xf32>
    %39 = arith.addf %36, %38 : vector<1x128xf32>
    %40 = math.rsqrt %39 : vector<1x128xf32>
    %41 = arith.mulf %37, %40 : vector<1x128xf32>
    %c0_18 = arith.constant 0 : index
    %c0_19 = arith.constant 0 : index
    %42 = vector.load %arg4[%c0_18, %c0_19] : memref<1x128xf32, #tpu.memory_space<vmem>>, vector<1x128xf32>
    %43 = arith.mulf %33, %41 : vector<1x128xf32>
    %44 = arith.subf %42, %43 : vector<1x128xf32>
    %45 = vector.broadcast %41 : vector<1x128xf32> to vector<16x128xf32>
    %46 = arith.mulf %20, %45 : vector<16x128xf32>
    %47 = vector.broadcast %44 : vector<1x128xf32> to vector<16x128xf32>
    %48 = arith.addf %46, %47 : vector<16x128xf32>
    %cst_20 = arith.constant 0.000000e+00 : f32
    %49 = vector.broadcast %cst_20 : f32 to vector<16x128xf32>
    %50 = arith.maximumf %48, %49 : vector<16x128xf32>
    %c1_i32_21 = arith.constant 1 : i32
    %51 = tpu.dynamic_rotate %50 by %c1_i32_21 dim 0 : vector<16x128xf32>, i32 -> vector<16x128xf32>
    %cst_22 = arith.constant 0.000000e+00 : f32
    %52 = vector.broadcast %cst_22 : f32 to vector<16x128xf32>
    %53 = arith.select %3, %51, %52 : vector<16x128xi1>, vector<16x128xf32>
    %c15_i32_23 = arith.constant 15 : i32
    %54 = tpu.dynamic_rotate %50 by %c15_i32_23 dim 0 : vector<16x128xf32>, i32 -> vector<16x128xf32>
    %cst_24 = arith.constant 0.000000e+00 : f32
    %55 = vector.broadcast %cst_24 : f32 to vector<16x128xf32>
    %56 = arith.select %5, %54, %55 : vector<16x128xi1>, vector<16x128xf32>
    %57 = arith.truncf %53 : vector<16x128xf32> to vector<16x128xbf16>
    %58 = arith.truncf %50 : vector<16x128xf32> to vector<16x128xbf16>
    %59 = arith.truncf %56 : vector<16x128xf32> to vector<16x128xbf16>
    %60 = tpu.concatenate %57, %58, %59 in 1 : vector<16x128xbf16>, vector<16x128xbf16>, vector<16x128xbf16> -> vector<16x384xbf16>
    %c0_25 = arith.constant 0 : index
    %c0_26 = arith.constant 0 : index
    %61 = vector.load %arg5[%c0_25, %c0_26] : memref<384x128xbf16, #tpu.memory_space<vmem>>, vector<384x128xbf16>
    %cst_27 = arith.constant dense<0.000000e+00> : vector<16x128xf32>
    %62 = tpu.matmul %60, %61, %cst_27 {dimension_numbers = #tpu.dot_dimension_numbers<[1], [0], [0], [1], [0, 0, 1, 1], [], []>} : vector<16x384xbf16>, vector<384x128xbf16>, vector<16x128xf32> -> vector<16x128xf32>
    %c0_28 = arith.constant 0 : index
    %c0_29 = arith.constant 0 : index
    %63 = vector.load %arg6[%c0_28, %c0_29] : memref<1x128xf32, #tpu.memory_space<vmem>>, vector<1x128xf32>
    %64 = vector.broadcast %63 : vector<1x128xf32> to vector<16x128xf32>
    %65 = arith.addf %62, %64 : vector<16x128xf32>
    %cst_30 = arith.constant dense<0.000000e+00> : vector<128xf32>
    %66 = vector.multi_reduction <add>, %65, %cst_30 [0] : vector<16x128xf32> to vector<128xf32>
    %67 = vector.shape_cast %66 : vector<128xf32> to vector<1x128xf32>
    %cst_31 = arith.constant 6.250000e-02 : f32
    %68 = vector.broadcast %cst_31 : f32 to vector<1x128xf32>
    %69 = arith.mulf %67, %68 : vector<1x128xf32>
    %70 = arith.mulf %65, %65 : vector<16x128xf32>
    %cst_32 = arith.constant dense<0.000000e+00> : vector<128xf32>
    %71 = vector.multi_reduction <add>, %70, %cst_32 [0] : vector<16x128xf32> to vector<128xf32>
    %72 = vector.shape_cast %71 : vector<128xf32> to vector<1x128xf32>
    %cst_33 = arith.constant 6.250000e-02 : f32
    %73 = vector.broadcast %cst_33 : f32 to vector<1x128xf32>
    %74 = arith.mulf %72, %73 : vector<1x128xf32>
    %75 = tpu.concatenate %69, %74 in 0 : vector<1x128xf32>, vector<1x128xf32> -> vector<2x128xf32>
    %c0_34 = arith.constant 0 : index
    %c0_35 = arith.constant 0 : index
    %76 = vector.load %arg9[%c0_34, %c0_35] : memref<128x128xf32, #tpu.memory_space<vmem>>, vector<128x128xf32>
    %cst_36 = arith.constant dense<0.000000e+00> : vector<2x128xf32>
    %77 = tpu.matmul %75, %76, %cst_36 {dimension_numbers = #tpu.dot_dimension_numbers<[1], [0], [0], [1], [0, 0, 1, 1], [], []>} : vector<2x128xf32>, vector<128x128xf32>, vector<2x128xf32> -> vector<2x128xf32>
    %78 = vector.extract_strided_slice %77 {offsets = [0, 0], sizes = [1, 128], strides = [1, 1]} : vector<2x128xf32> to vector<1x128xf32>
    %79 = vector.extract_strided_slice %77 {offsets = [1, 0], sizes = [1, 128], strides = [1, 1]} : vector<2x128xf32> to vector<1x128xf32>
    %80 = arith.mulf %78, %78 : vector<1x128xf32>
    %81 = arith.subf %79, %80 : vector<1x128xf32>
    %c0_37 = arith.constant 0 : index
    %c0_38 = arith.constant 0 : index
    %82 = vector.load %arg7[%c0_37, %c0_38] : memref<1x128xf32, #tpu.memory_space<vmem>>, vector<1x128xf32>
    %cst_39 = arith.constant 9.99999974E-6 : f32
    %83 = vector.broadcast %cst_39 : f32 to vector<1x128xf32>
    %84 = arith.addf %81, %83 : vector<1x128xf32>
    %85 = math.rsqrt %84 : vector<1x128xf32>
    %86 = arith.mulf %82, %85 : vector<1x128xf32>
    %c0_40 = arith.constant 0 : index
    %c0_41 = arith.constant 0 : index
    %87 = vector.load %arg8[%c0_40, %c0_41] : memref<1x128xf32, #tpu.memory_space<vmem>>, vector<1x128xf32>
    %88 = arith.mulf %78, %86 : vector<1x128xf32>
    %89 = arith.subf %87, %88 : vector<1x128xf32>
    %90 = vector.broadcast %86 : vector<1x128xf32> to vector<16x128xf32>
    %91 = arith.mulf %65, %90 : vector<16x128xf32>
    %92 = vector.broadcast %89 : vector<1x128xf32> to vector<16x128xf32>
    %93 = arith.addf %91, %92 : vector<16x128xf32>
    %94 = arith.addf %93, %0 : vector<16x128xf32>
    %cst_42 = arith.constant 0.000000e+00 : f32
    %95 = vector.broadcast %cst_42 : f32 to vector<16x128xf32>
    %96 = arith.maximumf %94, %95 : vector<16x128xf32>
    %c0_43 = arith.constant 0 : index
    %c0_44 = arith.constant 0 : index
    %97 = vector.load %arg10[%c0_43, %c0_44] : memref<16x128xf32, #tpu.memory_space<vmem>>, vector<16x128xf32>
    tpu.vector_store %arg10[%c0_43, %c0_44], %96 {strides = array<i32>} : memref<16x128xf32, #tpu.memory_space<vmem>>, vector<16x128xf32>,
    return
  }
}

</mosaic_0001>

<llo_original>
// kernel: resblock_pallas.1
$region0: #{resblock_pallas.1}
  #allocation0 [shape = 'u32[]', space=smem, size = 0x4, offset = 0x4, fixed_abs, tag = 'smem constant byte address 0x4 - core index']
  #allocation1 [shape = 'u32[144,128]{1,0:T(1,128)}', space=vmem, size = 0x12000, scoped, tag = 'internal scratch']
  %s0 = inlined_call_operand.vmem [shape: f32[16,128], index: 0, kind: input, shape index: {}, may-alias: {0,10}]
  %s1 = inlined_call_operand.vmem [shape: bf16[384,128], index: 1, kind: input, shape index: {}]
  %s2 = inlined_call_operand.vmem [shape: f32[1,128], index: 2, kind: input, shape index: {}]
  %s3 = inlined_call_operand.vmem [shape: f32[1,128], index: 3, kind: input, shape index: {}]
  %s4 = inlined_call_operand.vmem [shape: f32[1,128], index: 4, kind: input, shape index: {}]
  %s5 = inlined_call_operand.vmem [shape: bf16[384,128], index: 5, kind: input, shape index: {}]
  %s6 = inlined_call_operand.vmem [shape: f32[1,128], index: 6, kind: input, shape index: {}]
  %s7 = inlined_call_operand.vmem [shape: f32[1,128], index: 7, kind: input, shape index: {}]
  %s8 = inlined_call_operand.vmem [shape: f32[1,128], index: 8, kind: input, shape index: {}]
  %s9 = inlined_call_operand.vmem [shape: f32[128,128], index: 9, kind: input, shape index: {}]
  %s10 = inlined_call_operand.vmem [shape: f32[16,128], index: 10, kind: output, shape index: {}, may-alias: {0,10}]
  %s11 = sld [smem:[#allocation0]]
  $region50: #{resblock_pallas.1} parent=0
    _
  %s13 = ssub.s32 1, %s11
  %s14 = scalar_select 0, %s13, %s11
  // Predicated region
  $region2: #{resblock_pallas.1} parent=0 // pred_check
    _
  $region3: #{resblock_pallas.1} parent=0 // pred_check_branch
    %16 = sbr.rel (0) target = $region5
  $region4: #{resblock_pallas.1} parent=0 // pred_region
    _
  $region5: #{resblock_pallas.1} parent=0 // pred_fallthru
    _
  // Predicated region
  $region6: #{resblock_pallas.1} parent=0 // pred_check
    _
  $region7: #{resblock_pallas.1} parent=0 // pred_check_branch
    %18 = sbr.rel (0) target = $region9
  $region8: #{resblock_pallas.1} parent=0 // pred_region
    _
  $region9: #{resblock_pallas.1} parent=0 // pred_fallthru
    _
  // Predicated region
  $region10: #{resblock_pallas.1} parent=0 // pred_check
    _
  $region11: #{resblock_pallas.1} parent=0 // pred_check_branch
    %20 = sbr.rel (0) target = $region13
  $region12: #{resblock_pallas.1} parent=0 // pred_region
    _
  $region13: #{resblock_pallas.1} parent=0 // pred_fallthru
    _
  // Predicated region
  $region14: #{resblock_pallas.1} parent=0 // pred_check
    _
  $region15: #{resblock_pallas.1} parent=0 // pred_check_branch
    %22 = sbr.rel (0) target = $region17
  $region16: #{resblock_pallas.1} parent=0 // pred_region
    _
  $region17: #{resblock_pallas.1} parent=0 // pred_fallthru
    _
  // Predicated region
  $region18: #{resblock_pallas.1} parent=0 // pred_check
    _
  $region19: #{resblock_pallas.1} parent=0 // pred_check_branch
    %24 = sbr.rel (0) target = $region21
  $region20: #{resblock_pallas.1} parent=0 // pred_region
    _
  $region21: #{resblock_pallas.1} parent=0 // pred_fallthru
    _
  // Predicated region
  $region22: #{resblock_pallas.1} parent=0 // pred_check
    _
  $region23: #{resblock_pallas.1} parent=0 // pred_check_branch
    %26 = sbr.rel (0) target = $region25
  $region24: #{resblock_pallas.1} parent=0 // pred_region
    _
  $region25: #{resblock_pallas.1} parent=0 // pred_fallthru
    _
  // Predicated region
  $region26: #{resblock_pallas.1} parent=0 // pred_check
    _
  $region27: #{resblock_pallas.1} parent=0 // pred_check_branch
    %28 = sbr.rel (0) target = $region29
  $region28: #{resblock_pallas.1} parent=0 // pred_region
    _
  $region29: #{resblock_pallas.1} parent=0 // pred_fallthru
    _
  // Predicated region
  $region30: #{resblock_pallas.1} parent=0 // pred_check
    _
  $region31: #{resblock_pallas.1} parent=0 // pred_check_branch
    %30 = sbr.rel (0) target = $region33
  $region32: #{resblock_pallas.1} parent=0 // pred_region
    _
  $region33: #{resblock_pallas.1} parent=0 // pred_fallthru
    _
  // Predicated region
  $region34: #{resblock_pallas.1} parent=0 // pred_check
    _
  $region35: #{resblock_pallas.1} parent=0 // pred_check_branch
    %32 = sbr.rel (0) target = $region37
  $region36: #{resblock_pallas.1} parent=0 // pred_region
    _
  $region37: #{resblock_pallas.1} parent=0 // pred_fallthru
    _
  // Predicated region
  $region38: #{resblock_pallas.1} parent=0 // pred_check
    _
  $region39: #{resblock_pallas.1} parent=0 // pred_check_branch
    %34 = sbr.rel (0) target = $region41
  $region40: #{resblock_pallas.1} parent=0 // pred_region
    _
  $region41: #{resblock_pallas.1} parent=0 // pred_fallthru
    _
  %v36 = vld [vmem:[%s0] sm:$0xff]
  %v37 = vld [vmem:[%s0 + $0x8] sm:$0xff]
  %v38 = vlaneseq
  %v39 = vshrl.u32 %v38, 7
  %v40 = vadd.s32 %v39, 8
  %vm41 = vcmp.gt.s32.totalorder %v39, 0
  %vm42 = vcmp.gt.s32.totalorder %v40, 0
  %vm43 = vcmp.lt.s32.totalorder %v39, 15
  %vm44 = vcmp.lt.s32.totalorder %v40, 15
  %v45 = vrot.slane %v36, 7
  %v46 = vrot.slane %v37, 7
  %vm47 = vcmp.lt.s32.totalorder %v39, 1
  %v48 = vsel %vm47, %v45, %v46
  %v49 = vsel %vm47, %v46, %v45
  %v50 = vsel %vm41, %v49, 0.0
  %v51 = vsel %vm42, %v48, 0.0
  %v52 = vrot.slane %v36, 1
  %v53 = vrot.slane %v37, 1
  %vm54 = vcmp.lt.s32.totalorder %v39, 7
  %v55 = vsel %vm54, %v52, %v53
  %v56 = vsel %vm54, %v53, %v52
  %v57 = vsel %vm43, %v55, 0.0
  %v58 = vsel %vm44, %v56, 0.0
  %v59 = vpack.c.bf16 %v51, %v50
  %v60 = vpack.c.bf16 %v37, %v36
  %v61 = vpack.c.bf16 %v58, %v57
  %v62 = vld [vmem:[%s1] sm:$0xf]
  %v63 = vld [vmem:[%s1 + $0x4] sm:$0xf]
  %v64 = vld [vmem:[%s1 + $0x8] sm:$0xf]
  %v65 = vld [vmem:[%s1 + $0xc] sm:$0xf]
  %v66 = vld [vmem:[%s1 + $0x10] sm:$0xf]
  %v67 = vld [vmem:[%s1 + $0x14] sm:$0xf]
  %v68 = vld [vmem:[%s1 + $0x18] sm:$0xf]
  %v69 = vld [vmem:[%s1 + $0x1c] sm:$0xf]
  %v70 = vld [vmem:[%s1 + $0x20] sm:$0xf]
  %v71 = vld [vmem:[%s1 + $0x24] sm:$0xf]
  %v72 = vld [vmem:[%s1 + $0x28] sm:$0xf]
  %v73 = vld [vmem:[%s1 + $0x2c] sm:$0xf]
  %v74 = vld [vmem:[%s1 + $0x30] sm:$0xf]
  %v75 = vld [vmem:[%s1 + $0x34] sm:$0xf]
  %v76 = vld [vmem:[%s1 + $0x38] sm:$0xf]
  %v77 = vld [vmem:[%s1 + $0x3c] sm:$0xf]
  %v78 = vld [vmem:[%s1 + $0x40] sm:$0xf]
  %v79 = vld [vmem:[%s1 + $0x44] sm:$0xf]
  %v80 = vld [vmem:[%s1 + $0x48] sm:$0xf]
  %v81 = vld [vmem:[%s1 + $0x4c] sm:$0xf]
  %v82 = vld [vmem:[%s1 + $0x50] sm:$0xf]
  %v83 = vld [vmem:[%s1 + $0x54] sm:$0xf]
  %v84 = vld [vmem:[%s1 + $0x58] sm:$0xf]
  %v85 = vld [vmem:[%s1 + $0x5c] sm:$0xf]
  %v86 = vld [vmem:[%s1 + $0x60] sm:$0xf]
  %v87 = vld [vmem:[%s1 + $0x64] sm:$0xf]
  %v88 = vld [vmem:[%s1 + $0x68] sm:$0xf]
  %v89 = vld [vmem:[%s1 + $0x6c] sm:$0xf]
  %v90 = vld [vmem:[%s1 + $0x70] sm:$0xf]
  %v91 = vld [vmem:[%s1 + $0x74] sm:$0xf]
  %v92 = vld [vmem:[%s1 + $0x78] sm:$0xf]
  %v93 = vld [vmem:[%s1 + $0x7c] sm:$0xf]
  %v94 = vld [vmem:[%s1 + $0x80] sm:$0xf]
  %v95 = vld [vmem:[%s1 + $0x84] sm:$0xf]
  %v96 = vld [vmem:[%s1 + $0x88] sm:$0xf]
  %v97 = vld [vmem:[%s1 + $0x8c] sm:$0xf]
  %v98 = vld [vmem:[%s1 + $0x90] sm:$0xf]
  %v99 = vld [vmem:[%s1 + $0x94] sm:$0xf]
  %v100 = vld [vmem:[%s1 + $0x98] sm:$0xf]
  %v101 = vld [vmem:[%s1 + $0x9c] sm:$0xf]
  %v102 = vld [vmem:[%s1 + $0xa0] sm:$0xf]
  %v103 = vld [vmem:[%s1 + $0xa4] sm:$0xf]
  %v104 = vld [vmem:[%s1 + $0xa8] sm:$0xf]
  %v105 = vld [vmem:[%s1 + $0xac] sm:$0xf]
  %v106 = vld [vmem:[%s1 + $0xb0] sm:$0xf]
  %v107 = vld [vmem:[%s1 + $0xb4] sm:$0xf]
  %v108 = vld [vmem:[%s1 + $0xb8] sm:$0xf]
  %v109 = vld [vmem:[%s1 + $0xbc] sm:$0xf]
  %v110 = vld [vmem:[%s2] sm:$0x1]
  %v112 = vlaneseq
  %v113 = vshrl.u32 %v112, 7
  %v114 = vsub.s32 0, %v113
  %v115 = vrot.slane %v110, %v114
  %v165 = vunpack.c.l.b16 %v62
  %v166 = vunpack.c.l.b16 %v63
  %v167 = vunpack.c.l.b16 %v64
  %v168 = vunpack.c.l.b16 %v65
  %v169 = vunpack.c.l.b16 %v66
  %v170 = vunpack.c.l.b16 %v67
  %v171 = vunpack.c.l.b16 %v68
  %v172 = vunpack.c.l.b16 %v69
  %v173 = vunpack.c.l.b16 %v70
  %v174 = vunpack.c.l.b16 %v71
  %v175 = vunpack.c.l.b16 %v72
  %v176 = vunpack.c.l.b16 %v73
  %v177 = vunpack.c.l.b16 %v74
  %v178 = vunpack.c.l.b16 %v75
  %v179 = vunpack.c.l.b16 %v76
  %v180 = vunpack.c.l.b16 %v77
  %v181 = vunpack.c.l.b16 %v78
  %v182 = vunpack.c.l.b16 %v79
  %v183 = vunpack.c.l.b16 %v80
  %v184 = vunpack.c.l.b16 %v81
  %v185 = vunpack.c.l.b16 %v82
  %v186 = vunpack.c.l.b16 %v83
  %v187 = vunpack.c.l.b16 %v84
  %v188 = vunpack.c.l.b16 %v85
  %v189 = vunpack.c.l.b16 %v86
  %v190 = vunpack.c.l.b16 %v87
  %v191 = vunpack.c.l.b16 %v88
  %v192 = vunpack.c.l.b16 %v89
  %v193 = vunpack.c.l.b16 %v90
  %v194 = vunpack.c.l.b16 %v91
  %v195 = vunpack.c.l.b16 %v92
  %v196 = vunpack.c.l.b16 %v93
  %v197 = vunpack.c.l.b16 %v94
  %v198 = vunpack.c.l.b16 %v95
  %v199 = vunpack.c.l.b16 %v96
  %v200 = vunpack.c.l.b16 %v97
  %v201 = vunpack.c.l.b16 %v98
  %v202 = vunpack.c.l.b16 %v99
  %v203 = vunpack.c.l.b16 %v100
  %v204 = vunpack.c.l.b16 %v101
  %v205 = vunpack.c.l.b16 %v102
  %v206 = vunpack.c.l.b16 %v103
  %v207 = vunpack.c.l.b16 %v104
  %v208 = vunpack.c.l.b16 %v105
  %v209 = vunpack.c.l.b16 %v106
  %v210 = vunpack.c.l.b16 %v107
  %v211 = vunpack.c.l.b16 %v108
  %v212 = vunpack.c.l.b16 %v109
  %v213 = vpack.c.b16 %v166, %v165
  %v214 = vpack.c.b16 %v168, %v167
  %v215 = vpack.c.b16 %v170, %v169
  %v216 = vpack.c.b16 %v172, %v171
  %v217 = vpack.c.b16 %v174, %v173
  %v218 = vpack.c.b16 %v176, %v175
  %v219 = vpack.c.b16 %v178, %v177
  %v220 = vpack.c.b16 %v180, %v179
  %v221 = vpack.c.b16 %v182, %v181
  %v222 = vpack.c.b16 %v184, %v183
  %v223 = vpack.c.b16 %v186, %v185
  %v224 = vpack.c.b16 %v188, %v187
  %v225 = vpack.c.b16 %v190, %v189
  %v226 = vpack.c.b16 %v192, %v191
  %v227 = vpack.c.b16 %v194, %v193
  %v228 = vpack.c.b16 %v196, %v195
  %v229 = vpack.c.b16 %v198, %v197
  %v230 = vpack.c.b16 %v200, %v199
  %v231 = vpack.c.b16 %v202, %v201
  %v232 = vpack.c.b16 %v204, %v203
  %v233 = vpack.c.b16 %v206, %v205
  %v234 = vpack.c.b16 %v208, %v207
  %v235 = vpack.c.b16 %v210, %v209
  %v236 = vpack.c.b16 %v212, %v211
  %261 = vmatprep.subr.bf16.mxu0 0
  %262 = vmatpush1.bf16.msra.mxu0 %v213
  %263 = vmatprep.subr.bf16.mxu0 0
  %264 = vmatpush1.bf16.msra.mxu0 %v214
  %265 = vmatprep.subr.bf16.mxu0 0
  %266 = vmatpush1.bf16.msra.mxu0 %v215
  %267 = vmatprep.subr.bf16.mxu0 0
  %268 = vmatpush1.bf16.msra.mxu0 %v216
  %269 = vmatprep.subr.bf16.mxu0 0
  %270 = vmatpush1.bf16.msra.mxu0 %v217
  %271 = vmatprep.subr.bf16.mxu0 0
  %272 = vmatpush1.bf16.msra.mxu0 %v218
  %273 = vmatprep.subr.bf16.mxu0 0
  %274 = vmatpush1.bf16.msra.mxu0 %v219
  %275 = vmatprep.subr.bf16.mxu0 0
  %276 = vmatpush1.bf16.msra.mxu0 %v220
  %277 = vmatprep.subr.bf16.mxu0 0
  %278 = vmatpush1.bf16.msra.mxu0 %v221
  %279 = vmatprep.subr.bf16.mxu0 0
  %280 = vmatpush1.bf16.msra.mxu0 %v222
  %281 = vmatprep.subr.bf16.mxu0 0
  %282 = vmatpush1.bf16.msra.mxu0 %v223
  %283 = vmatprep.subr.bf16.mxu0 0
  %284 = vmatpush1.bf16.msra.mxu0 %v224
  %285 = vmatprep.subr.bf16.mxu0 0
  %286 = vmatpush1.bf16.msra.mxu0 %v225
  %287 = vmatprep.subr.bf16.mxu0 0
  %288 = vmatpush1.bf16.msra.mxu0 %v226
  %289 = vmatprep.subr.bf16.mxu0 0
  %290 = vmatpush1.bf16.msra.mxu0 %v227
  %291 = vmatprep.subr.bf16.mxu0 0
  %292 = vmatpush1.bf16.msra.mxu0 %v228
  %293 = vmatprep.mubr.bf16.mxu0 %v60
  %294 = vmatmul.mubr.bf16.gmra.mrb[0].mxu0 %v59
  %v295 = vpop.f32.mrb[0].mxu0
  %v296 = vadd.f32 %v115, %v295
  %v297 = vpop.f32.mrb[0].mxu0
  %v298 = vpop.f32.mrb[0].mxu0
  %v299 = vadd.f32 %v115, %v298
  %v300 = vpop.f32.mrb[0].mxu0
  %301 = vdwg.mxu0
  %302 = vmatprep.subr.bf16.mxu0 0
  %303 = vmatpush1.bf16.msra.mxu0 %v229
  %304 = vmatprep.subr.bf16.mxu0 0
  %305 = vmatpush1.bf16.msra.mxu0 %v230
  %306 = vmatprep.subr.bf16.mxu0 0
  %307 = vmatpush1.bf16.msra.mxu0 %v231
  %308 = vmatprep.subr.bf16.mxu0 0
  %309 = vmatpush1.bf16.msra.mxu0 %v232
  %310 = vmatprep.subr.bf16.mxu0 0
  %311 = vmatpush1.bf16.msra.mxu0 %v233
  %312 = vmatprep.subr.bf16.mxu0 0
  %313 = vmatpush1.bf16.msra.mxu0 %v234
  %314 = vmatprep.subr.bf16.mxu0 0
  %315 = vmatpush1.bf16.msra.mxu0 %v235
  %316 = vmatprep.subr.bf16.mxu0 0
  %317 = vmatpush1.bf16.msra.mxu0 %v236
  %318 = vmatprep.subr.bf16.mxu0 0
  %319 = vmatpush1.bf16.msra.mxu0 0
  %320 = vmatprep.subr.bf16.mxu0 0
  %321 = vmatpush1.bf16.msra.mxu0 0
  %322 = vmatprep.subr.bf16.mxu0 0
  %323 = vmatpush1.bf16.msra.mxu0 0
  %324 = vmatprep.subr.bf16.mxu0 0
  %325 = vmatpush1.bf16.msra.mxu0 0
  %326 = vmatprep.subr.bf16.mxu0 0
  %327 = vmatpush1.bf16.msra.mxu0 0
  %328 = vmatprep.subr.bf16.mxu0 0
  %329 = vmatpush1.bf16.msra.mxu0 0
  %330 = vmatprep.subr.bf16.mxu0 0
  %331 = vmatpush1.bf16.msra.mxu0 0
  %332 = vmatprep.subr.bf16.mxu0 0
  %333 = vmatpush1.bf16.msra.mxu0 0
  %334 = vmatprep.mubr.bf16.mxu0 0
  %335 = vmatmul.mubr.bf16.gmra.mrb[0].mxu0 %v61
  %v336 = vpop.f32.mrb[0].mxu0
  %v337 = vadd.f32 %v296, %v336
  %v338 = vpop.f32.mrb[0].mxu0
  %v339 = vpop.f32.mrb[0].mxu0
  %v340 = vadd.f32 %v299, %v339
  %v341 = vpop.f32.mrb[0].mxu0
  %342 = vdwg.mxu0
  %v343 = vadd.f32 %v337, %v340
  %v344 = vrot.slane %v343, 4
  %v345 = vadd.f32 %v343, %v344
  %v346 = vrot.slane %v345, 2
  %v347 = vadd.f32 %v345, %v346
  %v348 = vrot.slane %v347, 1
  %v349 = vadd.f32 %v347, %v348
  %v350 = vmul.f32 %v349, 0.0625
  %v351 = vmul.f32 %v337, %v337
  %v352 = vmul.f32 %v340, %v340
  %v353 = vadd.f32 %v351, %v352
  %v354 = vrot.slane %v353, 4
  %v355 = vadd.f32 %v353, %v354
  %v356 = vrot.slane %v355, 2
  %v357 = vadd.f32 %v355, %v356
  %v358 = vrot.slane %v357, 1
  %v359 = vadd.f32 %v357, %v358
  %v360 = vmul.f32 %v359, 0.0625
  %vm361 = vcmask 1040384
  %v362 = vsel %vm361, %v350, %v360
  %v363 = vld [vmem:[%s9] sm:$0xff]
  %v364 = vld [vmem:[%s9 + $0x8] sm:$0xff]
  %v365 = vld [vmem:[%s9 + $0x10] sm:$0xff]
  %v366 = vld [vmem:[%s9 + $0x18] sm:$0xff]
  %v367 = vld [vmem:[%s9 + $0x20] sm:$0xff]
  %v368 = vld [vmem:[%s9 + $0x28] sm:$0xff]
  %v369 = vld [vmem:[%s9 + $0x30] sm:$0xff]
  %v370 = vld [vmem:[%s9 + $0x38] sm:$0xff]
  %v371 = vld [vmem:[%s9 + $0x40] sm:$0xff]
  %v372 = vld [vmem:[%s9 + $0x48] sm:$0xff]
  %v373 = vld [vmem:[%s9 + $0x50] sm:$0xff]
  %v374 = vld [vmem:[%s9 + $0x58] sm:$0xff]
  %v375 = vld [vmem:[%s9 + $0x60] sm:$0xff]
  %v376 = vld [vmem:[%s9 + $0x68] sm:$0xff]
  %v377 = vld [vmem:[%s9 + $0x70] sm:$0xff]
  %v378 = vld [vmem:[%s9 + $0x78] sm:$0xff]
  %379 = vmatprep.subr.mxu0 0.0
  %380 = vmatpush1.msra.mxu0 %v363
  %381 = vmatprep.subr.mxu0 0.0
  %382 = vmatpush1.msra.mxu0 %v364
  %383 = vmatprep.subr.mxu0 0.0
  %384 = vmatpush1.msra.mxu0 %v365
  %385 = vmatprep.subr.mxu0 0.0
  %386 = vmatpush1.msra.mxu0 %v366
  %387 = vmatprep.subr.mxu0 0.0
  %388 = vmatpush1.msra.mxu0 %v367
  %389 = vmatprep.subr.mxu0 0.0
  %390 = vmatpush1.msra.mxu0 %v368
  %391 = vmatprep.subr.mxu0 0.0
  %392 = vmatpush1.msra.mxu0 %v369
  %393 = vmatprep.subr.mxu0 0.0
  %394 = vmatpush1.msra.mxu0 %v370
  %395 = vmatprep.subr.mxu0 0.0
  %396 = vmatpush1.msra.mxu0 %v371
  %397 = vmatprep.subr.mxu0 0.0
  %398 = vmatpush1.msra.mxu0 %v372
  %399 = vmatprep.subr.mxu0 0.0
  %400 = vmatpush1.msra.mxu0 %v373
  %401 = vmatprep.subr.mxu0 0.0
  %402 = vmatpush1.msra.mxu0 %v374
  %403 = vmatprep.subr.mxu0 0.0
  %404 = vmatpush1.msra.mxu0 %v375
  %405 = vmatprep.subr.mxu0 0.0
  %406 = vmatpush1.msra.mxu0 %v376
  %407 = vmatprep.subr.mxu0 0.0
  %408 = vmatpush1.msra.mxu0 %v377
  %409 = vmatprep.subr.mxu0 0.0
  %410 = vmatpush1.msra.mxu0 %v378
  %411 = vmatprep.subr.mxu0 0.0
  %412 = vmatpush1.msra.mxu0 0.0
  %413 = vmatprep.subr.mxu0 0.0
  %414 = vmatpush1.msra.mxu0 0.0
  %415 = vmatprep.subr.mxu0 0.0
  %416 = vmatpush1.msra.mxu0 0.0
  %417 = vmatprep.subr.mxu0 0.0
  %418 = vmatpush1.msra.mxu0 0.0
  %419 = vmatprep.subr.mxu0 0.0
  %420 = vmatpush1.msra.mxu0 0.0
  %421 = vmatprep.subr.mxu0 0.0
  %422 = vmatpush1.msra.mxu0 0.0
  %423 = vmatprep.subr.mxu0 0.0
  %424 = vmatpush1.msra.mxu0 0.0
  %425 = vmatprep.subr.mxu0 0.0
  %426 = vmatpush1.msra.mxu0 0.0
  %427 = vmatprep.subr.mxu0 0.0
  %428 = vmatpush1.msra.mxu0 0.0
  %429 = vmatprep.subr.mxu0 0.0
  %430 = vmatpush1.msra.mxu0 0.0
  %431 = vmatprep.subr.mxu0 0.0
  %432 = vmatpush1.msra.mxu0 0.0
  %433 = vmatprep.subr.mxu0 0.0
  %434 = vmatpush1.msra.mxu0 0.0
  %435 = vmatprep.subr.mxu0 0.0
  %436 = vmatpush1.msra.mxu0 0.0
  %437 = vmatprep.subr.mxu0 0.0
  %438 = vmatpush1.msra.mxu0 0.0
  %439 = vmatprep.subr.mxu0 0.0
  %440 = vmatpush1.msra.mxu0 0.0
  %441 = vmatprep.subr.mxu0 0.0
  %442 = vmatpush1.msra.mxu0 0.0
  %443 = vmatprep.mubr.f32.mxu0 0.0
  %444 = vmatmul.mubr.f32.gmra.mrb[0].mxu0 %v362
  %v445 = vpop.f32.mrb[0].mxu0
  %v446 = vadd.f32 0.0, %v445
  %v447 = vpop.f32.mrb[0].mxu0
  %448 = vdwg.mxu0
  %v449 = vmul.f32 %v446, %v446
  %v451 = vrot.slane %v449, 7
  %v453 = vsub.f32 %v446, %v451
  %v454 = vld [vmem:[%s3] sm:$0x1]
  %v455 = vadd.f32 %v453, 1e-05
  %v456 = vrsqrt.pop %v455
  %v459 = vunpack.c.l.s4 1966171168
  %v460 = vunpack.c.0.s8 %v459
  %v461 = vlaneseq
  %v462 = vshrl.u32 %v461, 7
  %v463 = vsub.s32 %v460, %v462
  %v464 = vrot.slane %v456, %v463
  %v465 = vcombine.high %v464, %v464
  %v467 = vunpack.c.l.s4 1966171168
  %v468 = vunpack.c.0.s8 %v467
  %v469 = vlaneseq
  %v470 = vshrl.u32 %v469, 7
  %v471 = vsub.s32 %v468, %v470
  %v472 = vrot.slane %v465, %v471
  %v474 = vmul.f32 %v454, %v472
  %v475 = vld [vmem:[%s4] sm:$0x1]
  %v476 = vmul.f32 %v446, %v474
  %v477 = vsub.f32 %v475, %v476
  %v479 = vlaneseq
  %v480 = vshrl.u32 %v479, 7
  %v481 = vsub.s32 0, %v480
  %v482 = vrot.slane %v474, %v481
  %v484 = vmul.f32 %v337, %v482
  %v485 = vmul.f32 %v340, %v482
  %v487 = vlaneseq
  %v488 = vshrl.u32 %v487, 7
  %v489 = vsub.s32 0, %v488
  %v490 = vrot.slane %v477, %v489
  %v492 = vadd.f32 %v484, %v490
  %v493 = vadd.f32 %v485, %v490
  %v494 = vmax.f32 %v492, 0.0
  %v495 = vmax.f32 %v493, 0.0
  %v496 = vrot.slane %v494, 7
  %v497 = vrot.slane %v495, 7
  %v498 = vsel %vm47, %v496, %v497
  %v499 = vsel %vm47, %v497, %v496
  %v500 = vsel %vm41, %v499, 0.0
  %v501 = vsel %vm42, %v498, 0.0
  %v502 = vrot.slane %v494, 1
  %v503 = vrot.slane %v495, 1
  %v504 = vsel %vm54, %v502, %v503
  %v505 = vsel %vm54, %v503, %v502
  %v506 = vsel %vm43, %v504, 0.0
  %v507 = vsel %vm44, %v505, 0.0
  %v508 = vpack.c.bf16 %v501, %v500
  %v509 = vpack.c.bf16 %v495, %v494
  %v510 = vpack.c.bf16 %v507, %v506
  %v511 = vld [vmem:[%s5] sm:$0xf]
  %v512 = vld [vmem:[%s5 + $0x4] sm:$0xf]
  %v513 = vld [vmem:[%s5 + $0x8] sm:$0xf]
  %v514 = vld [vmem:[%s5 + $0xc] sm:$0xf]
  %v515 = vld [vmem:[%s5 + $0x10] sm:$0xf]
  %v516 = vld [vmem:[%s5 + $0x14] sm:$0xf]
  %v517 = vld [vmem:[%s5 + $0x18] sm:$0xf]
  %v518 = vld [vmem:[%s5 + $0x1c] sm:$0xf]
  %v519 = vld [vmem:[%s5 + $0x20] sm:$0xf]
  %v520 = vld [vmem:[%s5 + $0x24] sm:$0xf]
  %v521 = vld [vmem:[%s5 + $0x28] sm:$0xf]
  %v522 = vld [vmem:[%s5 + $0x2c] sm:$0xf]
  %v523 = vld [vmem:[%s5 + $0x30] sm:$0xf]
  %v524 = vld [vmem:[%s5 + $0x34] sm:$0xf]
  %v525 = vld [vmem:[%s5 + $0x38] sm:$0xf]
  %v526 = vld [vmem:[%s5 + $0x3c] sm:$0xf]
  %v527 = vld [vmem:[%s5 + $0x40] sm:$0xf]
  %v528 = vld [vmem:[%s5 + $0x44] sm:$0xf]
  %v529 = vld [vmem:[%s5 + $0x48] sm:$0xf]
  %v530 = vld [vmem:[%s5 + $0x4c] sm:$0xf]
  %v531 = vld [vmem:[%s5 + $0x50] sm:$0xf]
  %v532 = vld [vmem:[%s5 + $0x54] sm:$0xf]
  %v533 = vld [vmem:[%s5 + $0x58] sm:$0xf]
  %v534 = vld [vmem:[%s5 + $0x5c] sm:$0xf]
  %v535 = vld [vmem:[%s5 + $0x60] sm:$0xf]
  %v536 = vld [vmem:[%s5 + $0x64] sm:$0xf]
  %v537 = vld [vmem:[%s5 + $0x68] sm:$0xf]
  %v538 = vld [vmem:[%s5 + $0x6c] sm:$0xf]
  %v539 = vld [vmem:[%s5 + $0x70] sm:$0xf]
  %v540 = vld [vmem:[%s5 + $0x74] sm:$0xf]
  %v541 = vld [vmem:[%s5 + $0x78] sm:$0xf]
  %v542 = vld [vmem:[%s5 + $0x7c] sm:$0xf]
  %v543 = vld [vmem:[%s5 + $0x80] sm:$0xf]
  %v544 = vld [vmem:[%s5 + $0x84] sm:$0xf]
  %v545 = vld [vmem:[%s5 + $0x88] sm:$0xf]
  %v546 = vld [vmem:[%s5 + $0x8c] sm:$0xf]
  %v547 = vld [vmem:[%s5 + $0x90] sm:$0xf]
  %v548 = vld [vmem:[%s5 + $0x94] sm:$0xf]
  %v549 = vld [vmem:[%s5 + $0x98] sm:$0xf]
  %v550 = vld [vmem:[%s5 + $0x9c] sm:$0xf]
  %v551 = vld [vmem:[%s5 + $0xa0] sm:$0xf]
  %v552 = vld [vmem:[%s5 + $0xa4] sm:$0xf]
  %v553 = vld [vmem:[%s5 + $0xa8] sm:$0xf]
  %v554 = vld [vmem:[%s5 + $0xac] sm:$0xf]
  %v555 = vld [vmem:[%s5 + $0xb0] sm:$0xf]
  %v556 = vld [vmem:[%s5 + $0xb4] sm:$0xf]
  %v557 = vld [vmem:[%s5 + $0xb8] sm:$0xf]
  %v558 = vld [vmem:[%s5 + $0xbc] sm:$0xf]
  %v559 = vld [vmem:[%s6] sm:$0x1]
  %v561 = vlaneseq
  %v562 = vshrl.u32 %v561, 7
  %v563 = vsub.s32 0, %v562
  %v564 = vrot.slane %v559, %v563
  %v614 = vunpack.c.l.b16 %v511
  %v615 = vunpack.c.l.b16 %v512
  %v616 = vunpack.c.l.b16 %v513
  %v617 = vunpack.c.l.b16 %v514
  %v618 = vunpack.c.l.b16 %v515
  %v619 = vunpack.c.l.b16 %v516
  %v620 = vunpack.c.l.b16 %v517
  %v621 = vunpack.c.l.b16 %v518
  %v622 = vunpack.c.l.b16 %v519
  %v623 = vunpack.c.l.b16 %v520
  %v624 = vunpack.c.l.b16 %v521
  %v625 = vunpack.c.l.b16 %v522
  %v626 = vunpack.c.l.b16 %v523
  %v627 = vunpack.c.l.b16 %v524
  %v628 = vunpack.c.l.b16 %v525
  %v629 = vunpack.c.l.b16 %v526
  %v630 = vunpack.c.l.b16 %v527
  %v631 = vunpack.c.l.b16 %v528
  %v632 = vunpack.c.l.b16 %v529
  %v633 = vunpack.c.l.b16 %v530
  %v634 = vunpack.c.l.b16 %v531
  %v635 = vunpack.c.l.b16 %v532
  %v636 = vunpack.c.l.b16 %v533
  %v637 = vunpack.c.l.b16 %v534
  %v638 = vunpack.c.l.b16 %v535
  %v639 = vunpack.c.l.b16 %v536
  %v640 = vunpack.c.l.b16 %v537
  %v641 = vunpack.c.l.b16 %v538
  %v642 = vunpack.c.l.b16 %v539
  %v643 = vunpack.c.l.b16 %v540
  %v644 = vunpack.c.l.b16 %v541
  %v645 = vunpack.c.l.b16 %v542
  %v646 = vunpack.c.l.b16 %v543
  %v647 = vunpack.c.l.b16 %v544
  %v648 = vunpack.c.l.b16 %v545
  %v649 = vunpack.c.l.b16 %v546
  %v650 = vunpack.c.l.b16 %v547
  %v651 = vunpack.c.l.b16 %v548
  %v652 = vunpack.c.l.b16 %v549
  %v653 = vunpack.c.l.b16 %v550
  %v654 = vunpack.c.l.b16 %v551
  %v655 = vunpack.c.l.b16 %v552
  %v656 = vunpack.c.l.b16 %v553
  %v657 = vunpack.c.l.b16 %v554
  %v658 = vunpack.c.l.b16 %v555
  %v659 = vunpack.c.l.b16 %v556
  %v660 = vunpack.c.l.b16 %v557
  %v661 = vunpack.c.l.b16 %v558
  %v662 = vpack.c.b16 %v615, %v614
  %v663 = vpack.c.b16 %v617, %v616
  %v664 = vpack.c.b16 %v619, %v618
  %v665 = vpack.c.b16 %v621, %v620
  %v666 = vpack.c.b16 %v623, %v622
  %v667 = vpack.c.b16 %v625, %v624
  %v668 = vpack.c.b16 %v627, %v626
  %v669 = vpack.c.b16 %v629, %v628
  %v670 = vpack.c.b16 %v631, %v630
  %v671 = vpack.c.b16 %v633, %v632
  %v672 = vpack.c.b16 %v635, %v634
  %v673 = vpack.c.b16 %v637, %v636
  %v674 = vpack.c.b16 %v639, %v638
  %v675 = vpack.c.b16 %v641, %v640
  %v676 = vpack.c.b16 %v643, %v642
  %v677 = vpack.c.b16 %v645, %v644
  %v678 = vpack.c.b16 %v647, %v646
  %v679 = vpack.c.b16 %v649, %v648
  %v680 = vpack.c.b16 %v651, %v650
  %v681 = vpack.c.b16 %v653, %v652
  %v682 = vpack.c.b16 %v655, %v654
  %v683 = vpack.c.b16 %v657, %v656
  %v684 = vpack.c.b16 %v659, %v658
  %v685 = vpack.c.b16 %v661, %v660
  %710 = vmatprep.subr.bf16.mxu0 0
  %711 = vmatpush1.bf16.msra.mxu0 %v662
  %712 = vmatprep.subr.bf16.mxu0 0
  %713 = vmatpush1.bf16.msra.mxu0 %v663
  %714 = vmatprep.subr.bf16.mxu0 0
  %715 = vmatpush1.bf16.msra.mxu0 %v664
  %716 = vmatprep.subr.bf16.mxu0 0
  %717 = vmatpush1.bf16.msra.mxu0 %v665
  %718 = vmatprep.subr.bf16.mxu0 0
  %719 = vmatpush1.bf16.msra.mxu0 %v666
  %720 = vmatprep.subr.bf16.mxu0 0
  %721 = vmatpush1.bf16.msra.mxu0 %v667
  %722 = vmatprep.subr.bf16.mxu0 0
  %723 = vmatpush1.bf16.msra.mxu0 %v668
  %724 = vmatprep.subr.bf16.mxu0 0
  %725 = vmatpush1.bf16.msra.mxu0 %v669
  %726 = vmatprep.subr.bf16.mxu0 0
  %727 = vmatpush1.bf16.msra.mxu0 %v670
  %728 = vmatprep.subr.bf16.mxu0 0
  %729 = vmatpush1.bf16.msra.mxu0 %v671
  %730 = vmatprep.subr.bf16.mxu0 0
  %731 = vmatpush1.bf16.msra.mxu0 %v672
  %732 = vmatprep.subr.bf16.mxu0 0
  %733 = vmatpush1.bf16.msra.mxu0 %v673
  %734 = vmatprep.subr.bf16.mxu0 0
  %735 = vmatpush1.bf16.msra.mxu0 %v674
  %736 = vmatprep.subr.bf16.mxu0 0
  %737 = vmatpush1.bf16.msra.mxu0 %v675
  %738 = vmatprep.subr.bf16.mxu0 0
  %739 = vmatpush1.bf16.msra.mxu0 %v676
  %740 = vmatprep.subr.bf16.mxu0 0
  %741 = vmatpush1.bf16.msra.mxu0 %v677
  %742 = vmatprep.mubr.bf16.mxu0 %v509
  %743 = vmatmul.mubr.bf16.gmra.mrb[0].mxu0 %v508
  %v744 = vpop.f32.mrb[0].mxu0
  %v745 = vadd.f32 %v564, %v744
  %v746 = vpop.f32.mrb[0].mxu0
  %v747 = vpop.f32.mrb[0].mxu0
  %v748 = vadd.f32 %v564, %v747
  %v749 = vpop.f32.mrb[0].mxu0
  %750 = vdwg.mxu0
  %751 = vmatprep.subr.bf16.mxu0 0
  %752 = vmatpush1.bf16.msra.mxu0 %v678
  %753 = vmatprep.subr.bf16.mxu0 0
  %754 = vmatpush1.bf16.msra.mxu0 %v679
  %755 = vmatprep.subr.bf16.mxu0 0
  %756 = vmatpush1.bf16.msra.mxu0 %v680
  %757 = vmatprep.subr.bf16.mxu0 0
  %758 = vmatpush1.bf16.msra.mxu0 %v681
  %759 = vmatprep.subr.bf16.mxu0 0
  %760 = vmatpush1.bf16.msra.mxu0 %v682
  %761 = vmatprep.subr.bf16.mxu0 0
  %762 = vmatpush1.bf16.msra.mxu0 %v683
  %763 = vmatprep.subr.bf16.mxu0 0
  %764 = vmatpush1.bf16.msra.mxu0 %v684
  %765 = vmatprep.subr.bf16.mxu0 0
  %766 = vmatpush1.bf16.msra.mxu0 %v685
  %767 = vmatprep.subr.bf16.mxu0 0
  %768 = vmatpush1.bf16.msra.mxu0 0
  %769 = vmatprep.subr.bf16.mxu0 0
  %770 = vmatpush1.bf16.msra.mxu0 0
  %771 = vmatprep.subr.bf16.mxu0 0
  %772 = vmatpush1.bf16.msra.mxu0 0
  %773 = vmatprep.subr.bf16.mxu0 0
  %774 = vmatpush1.bf16.msra.mxu0 0
  %775 = vmatprep.subr.bf16.mxu0 0
  %776 = vmatpush1.bf16.msra.mxu0 0
  %777 = vmatprep.subr.bf16.mxu0 0
  %778 = vmatpush1.bf16.msra.mxu0 0
  %779 = vmatprep.subr.bf16.mxu0 0
  %780 = vmatpush1.bf16.msra.mxu0 0
  %781 = vmatprep.subr.bf16.mxu0 0
  %782 = vmatpush1.bf16.msra.mxu0 0
  %783 = vmatprep.mubr.bf16.mxu0 0
  %784 = vmatmul.mubr.bf16.gmra.mrb[0].mxu0 %v510
  %v785 = vpop.f32.mrb[0].mxu0
  %v786 = vadd.f32 %v745, %v785
  %v787 = vpop.f32.mrb[0].mxu0
  %v788 = vpop.f32.mrb[0].mxu0
  %v789 = vadd.f32 %v748, %v788
  %v790 = vpop.f32.mrb[0].mxu0
  %791 = vdwg.mxu0
  %v792 = vadd.f32 %v786, %v789
  %v793 = vrot.slane %v792, 4
  %v794 = vadd.f32 %v792, %v793
  %v795 = vrot.slane %v794, 2
  %v796 = vadd.f32 %v794, %v795
  %v797 = vrot.slane %v796, 1
  %v798 = vadd.f32 %v796, %v797
  %v799 = vmul.f32 %v798, 0.0625
  %v800 = vmul.f32 %v786, %v786
  %v801 = vmul.f32 %v789, %v789
  %v802 = vadd.f32 %v800, %v801
  %v803 = vrot.slane %v802, 4
  %v804 = vadd.f32 %v802, %v803
  %v805 = vrot.slane %v804, 2
  %v806 = vadd.f32 %v804, %v805
  %v807 = vrot.slane %v806, 1
  %v808 = vadd.f32 %v806, %v807
  %v809 = vmul.f32 %v808, 0.0625
  %v810 = vsel %vm361, %v799, %v809
  %811 = vmatprep.subr.mxu0 0.0
  %812 = vmatpush1.msra.mxu0 %v363
  %813 = vmatprep.subr.mxu0 0.0
  %814 = vmatpush1.msra.mxu0 %v364
  %815 = vmatprep.subr.mxu0 0.0
  %816 = vmatpush1.msra.mxu0 %v365
  %817 = vmatprep.subr.mxu0 0.0
  %818 = vmatpush1.msra.mxu0 %v366
  %819 = vmatprep.subr.mxu0 0.0
  %820 = vmatpush1.msra.mxu0 %v367
  %821 = vmatprep.subr.mxu0 0.0
  %822 = vmatpush1.msra.mxu0 %v368
  %823 = vmatprep.subr.mxu0 0.0
  %824 = vmatpush1.msra.mxu0 %v369
  %825 = vmatprep.subr.mxu0 0.0
  %826 = vmatpush1.msra.mxu0 %v370
  %827 = vmatprep.subr.mxu0 0.0
  %828 = vmatpush1.msra.mxu0 %v371
  %829 = vmatprep.subr.mxu0 0.0
  %830 = vmatpush1.msra.mxu0 %v372
  %831 = vmatprep.subr.mxu0 0.0
  %832 = vmatpush1.msra.mxu0 %v373
  %833 = vmatprep.subr.mxu0 0.0
  %834 = vmatpush1.msra.mxu0 %v374
  %835 = vmatprep.subr.mxu0 0.0
  %836 = vmatpush1.msra.mxu0 %v375
  %837 = vmatprep.subr.mxu0 0.0
  %838 = vmatpush1.msra.mxu0 %v376
  %839 = vmatprep.subr.mxu0 0.0
  %840 = vmatpush1.msra.mxu0 %v377
  %841 = vmatprep.subr.mxu0 0.0
  %842 = vmatpush1.msra.mxu0 %v378
  %843 = vmatprep.subr.mxu0 0.0
  %844 = vmatpush1.msra.mxu0 0.0
  %845 = vmatprep.subr.mxu0 0.0
  %846 = vmatpush1.msra.mxu0 0.0
  %847 = vmatprep.subr.mxu0 0.0
  %848 = vmatpush1.msra.mxu0 0.0
  %849 = vmatprep.subr.mxu0 0.0
  %850 = vmatpush1.msra.mxu0 0.0
  %851 = vmatprep.subr.mxu0 0.0
  %852 = vmatpush1.msra.mxu0 0.0
  %853 = vmatprep.subr.mxu0 0.0
  %854 = vmatpush1.msra.mxu0 0.0
  %855 = vmatprep.subr.mxu0 0.0
  %856 = vmatpush1.msra.mxu0 0.0
  %857 = vmatprep.subr.mxu0 0.0
  %858 = vmatpush1.msra.mxu0 0.0
  %859 = vmatprep.subr.mxu0 0.0
  %860 = vmatpush1.msra.mxu0 0.0
  %861 = vmatprep.subr.mxu0 0.0
  %862 = vmatpush1.msra.mxu0 0.0
  %863 = vmatprep.subr.mxu0 0.0
  %864 = vmatpush1.msra.mxu0 0.0
  %865 = vmatprep.subr.mxu0 0.0
  %866 = vmatpush1.msra.mxu0 0.0
  %867 = vmatprep.subr.mxu0 0.0
  %868 = vmatpush1.msra.mxu0 0.0
  %869 = vmatprep.subr.mxu0 0.0
  %870 = vmatpush1.msra.mxu0 0.0
  %871 = vmatprep.subr.mxu0 0.0
  %872 = vmatpush1.msra.mxu0 0.0
  %873 = vmatprep.subr.mxu0 0.0
  %874 = vmatpush1.msra.mxu0 0.0
  %875 = vmatprep.mubr.f32.mxu0 0.0
  %876 = vmatmul.mubr.f32.gmra.mrb[0].mxu0 %v810
  %v877 = vpop.f32.mrb[0].mxu0
  %v878 = vadd.f32 0.0, %v877
  %v879 = vpop.f32.mrb[0].mxu0
  %880 = vdwg.mxu0
  %v881 = vmul.f32 %v878, %v878
  %v883 = vrot.slane %v881, 7
  %v885 = vsub.f32 %v878, %v883
  %v886 = vld [vmem:[%s7] sm:$0x1]
  %v887 = vadd.f32 %v885, 1e-05
  %v888 = vrsqrt.pop %v887
  %v891 = vunpack.c.l.s4 1966171168
  %v892 = vunpack.c.0.s8 %v891
  %v893 = vlaneseq
  %v894 = vshrl.u32 %v893, 7
  %v895 = vsub.s32 %v892, %v894
  %v896 = vrot.slane %v888, %v895
  %v897 = vcombine.high %v896, %v896
  %v899 = vunpack.c.l.s4 1966171168
  %v900 = vunpack.c.0.s8 %v899
  %v901 = vlaneseq
  %v902 = vshrl.u32 %v901, 7
  %v903 = vsub.s32 %v900, %v902
  %v904 = vrot.slane %v897, %v903
  %v906 = vmul.f32 %v886, %v904
  %v907 = vld [vmem:[%s8] sm:$0x1]
  %v908 = vmul.f32 %v878, %v906
  %v909 = vsub.f32 %v907, %v908
  %v911 = vlaneseq
  %v912 = vshrl.u32 %v911, 7
  %v913 = vsub.s32 0, %v912
  %v914 = vrot.slane %v906, %v913
  %v916 = vmul.f32 %v786, %v914
  %v917 = vmul.f32 %v789, %v914
  %v919 = vlaneseq
  %v920 = vshrl.u32 %v919, 7
  %v921 = vsub.s32 0, %v920
  %v922 = vrot.slane %v909, %v921
  %v924 = vadd.f32 %v916, %v922
  %v925 = vadd.f32 %v917, %v922
  %v926 = vadd.f32 %v924, %v36
  %v927 = vadd.f32 %v925, %v37
  %v928 = vmax.f32 %v926, 0.0
  %v929 = vmax.f32 %v927, 0.0
  %930 = vst [vmem:[%s10] sm:$0xff] %v928
  %931 = vst [vmem:[%s10 + $0x8] sm:$0xff] %v929
  // Predicated region
  $region42: #{resblock_pallas.1} parent=0 // pred_check
    _
  $region43: #{resblock_pallas.1} parent=0 // pred_check_branch
    %933 = sbr.rel (0) target = $region45
  $region44: #{resblock_pallas.1} parent=0 // pred_region
    _
  $region45: #{resblock_pallas.1} parent=0 // pred_fallthru
    _
  // Predicated region
  $region46: #{resblock_pallas.1} parent=0 // pred_check
    _
  $region47: #{resblock_pallas.1} parent=0 // pred_check_branch
    %935 = sbr.rel (0) target = $region49
  $region48: #{resblock_pallas.1} parent=0 // pred_region
    _
  $region49: #{resblock_pallas.1} parent=0 // pred_fallthru
    _

</llo_original>
